<compile_context>
chip_gen: v5e
topology: v5e:2x2
jax: 0.10.0
libtpu: 0.0.40
codegen_flags: <defaults>
</compile_context>

<pallas_src>
import functools

import jax
import jax.numpy as jnp
from jax import lax
from jax.experimental import pallas as pl
from jax.experimental.pallas import tpu as pltpu

_MIB = 1024 * 1024
_VMEM_CAP = 48 * _MIB      # safe on v7x (64 MiB physical VMEM per TensorCore)
_VMEM_SLACK = 4 * _MIB     # headroom for compiler-internal scratch


# ------------------------------ kernels -------------------------------------


def _pool_kernel(x_ref, mean_ref, *, hw, hw_tile, inv_hw):
    # x_ref: (R, HW_tile) slab of the flattened (B*C, HW) input.
    # mean_ref: (R, 1) f32 output block, VMEM-resident across the HW grid axis.
    h = pl.program_id(1)

    @pl.when(h == 0)
    def _():
        mean_ref[...] = jnp.zeros_like(mean_ref)

    x = x_ref[...].astype(jnp.float32)
    if hw % hw_tile != 0:
        # Tail HW block: zero out-of-bounds lanes before reducing.
        lane = lax.broadcasted_iota(jnp.int32, x.shape, 1)
        x = jnp.where(h * hw_tile + lane < hw, x, 0.0)
    # TODO(synk): if a v7x bundle shows XLU/vst slot pressure here, accumulate
    # into a (R, 128) VMEM scratch and cross-lane reduce only on the last HW
    # step; Stage 1 is HBM-bound on v5e/v6e so it is neutral there.
    mean_ref[...] += jnp.sum(x, axis=1, keepdims=True)

    @pl.when(h == pl.num_programs(1) - 1)
    def _():
        mean_ref[...] *= inv_hw


def _scale_kernel(x_ref, g_ref, o_ref):
    # x_ref/o_ref: (R, HW_tile) lane-dense slabs; g_ref: (R, 1) f32 gate.
    # Multiply in f32 (matches the reference), cast on store.
    o_ref[...] = (x_ref[...].astype(jnp.float32) * g_ref[...]).astype(o_ref.dtype)


# --------------------------- sizing helpers ----------------------------------


def _round_up(n, m):
    return ((n + m - 1) // m) * m


def _sublane_pack(dtype):
    """Rows per packed sublane tile: 8 (f32), 16 (bf16), 32 (int8/fp8)."""
    return max(8, 32 // jnp.dtype(dtype).itemsize)


def _pick_row_tile(bc, dtype, max_rows=512):
    pack = _sublane_pack(dtype)
    if bc <= pack:
        return bc  # single block equal to the full dim (always legal)
    # Aim for >=2 row blocks so both v7x TensorCores get work, rounded to the
    # dtype's sublane pack and capped so blocks stay well inside VMEM.
    tile = min(max_rows, _round_up(pl.cdiv(bc, 2), pack))
    if tile >= bc:
        tile = bc
    return tile


def _pick_hw_tile(hw, max_hw=4096):
    if hw <= max_hw:
        return hw      # single full-extent block along HW
    return max_hw      # multiple of 128; cdiv grid + masking handles the tail


def _vmem_limit(block_bytes):
    """2x double-buffered block bytes + slack, capped for v7x's 64 MiB VMEM."""
    need = 2 * int(block_bytes) + _VMEM_SLACK
    return int(min(max(need, 8 * _MIB), _VMEM_CAP))


# ------------------------------ wrapper ---------------------------------------


def se_layer(x, w1, w2, *, donate_x=False):
    """x: (B, C, H, W); w1: (C//r, C); w2: (C, C//r)  (nn.Linear layouts)."""
    B, C, H, W = x.shape
    HW = H * W
    BC = B * C
    x_bytes = jnp.dtype(x.dtype).itemsize

    x_flat = x.reshape(BC, HW)  # row-major flatten: bitcast, no relayout copy
    row_tile = _pick_row_tile(BC, x.dtype)
    hw_tile = _pick_hw_tile(HW)
    n_rows = pl.cdiv(BC, row_tile)
    n_hw = pl.cdiv(HW, hw_tile)
    x_block_bytes = row_tile * hw_tile * x_bytes

    # -- Stage 1: global average pool, streamed & accumulated in f32. --------
    pooled = pl.pallas_call(
        functools.partial(_pool_kernel, hw=HW, hw_tile=hw_tile, inv_hw=1.0 / HW),
        out_shape=jax.ShapeDtypeStruct((BC, 1), jnp.float32),
        grid=(n_rows, n_hw),
        in_specs=[pl.BlockSpec((row_tile, hw_tile), lambda r, h: (r, h))],
        out_specs=pl.BlockSpec((row_tile, 1), lambda r, h: (r, 0)),
        compiler_params=pltpu.CompilerParams(
            dimension_semantics=("parallel", "arbitrary"),
            vmem_limit_bytes=_vmem_limit(x_block_bytes + row_tile * 4)),
    )(x_flat)

    # -- Stage 2: excitation MLP in plain jnp (tiny; no kernel dispatch). -----
    p = pooled.reshape(B, C)
    dn = (((1,), (1,)), ((), ()))  # contract dim 1 of both: p @ w.T, no transpose copy
    hmid = lax.dot_general(p, w1.astype(jnp.float32), dn,
                           preferred_element_type=jnp.float32)
    hmid = jnp.maximum(hmid, 0.0)
    s = lax.dot_general(hmid, w2.astype(jnp.float32), dn,
                        preferred_element_type=jnp.float32)
    gates = jax.nn.sigmoid(s).reshape(BC, 1)  # f32; multiplied in f32 in Stage 3

    # -- Stage 3: lane-dense elementwise rescale of x. ------------------------
    # TODO(synk): sweep pipeline_mode=pl.Buffered(3) on the x input for v7x.
    out_flat = pl.pallas_call(
        _scale_kernel,
        out_shape=jax.ShapeDtypeStruct((BC, HW), x.dtype),
        grid=(n_rows, n_hw),
        in_specs=[
            pl.BlockSpec((row_tile, hw_tile), lambda r, h: (r, h)),
            pl.BlockSpec((row_tile, 1), lambda r, h: (r, 0)),
        ],
        out_specs=pl.BlockSpec((row_tile, hw_tile), lambda r, h: (r, h)),
        compiler_params=pltpu.CompilerParams(
            dimension_semantics=("parallel", "parallel"),
            vmem_limit_bytes=_vmem_limit(2 * x_block_bytes + row_tile * 4)),
        # Optionally reuse x's HBM buffer for the output when the caller can
        # give x up (saves a B*C*H*W allocation; matters on v5e's 16 GiB HBM).
        input_output_aliases=({0: 0} if donate_x else {}),
    )(x_flat, gates)

    return out_flat.reshape(B, C, H, W)


def se_layer_ref(x, w1, w2):
    """Pure-JAX reference mirroring the PyTorch forward."""
    y = jnp.mean(x, axis=(2, 3))                  # (b, c)
    y = jnp.maximum(y @ w1.T, 0.0)                # (b, c//r)
    y = jax.nn.sigmoid(y @ w2.T)                  # (b, c)
    return x * y[:, :, None, None]


if __name__ == "__main__":
    key = jax.random.PRNGKey(0)

    def _run_case(B, C, H, W, reduction, subkey):
        Cr = max(C // reduction, 1)
        kx, k1, k2 = jax.random.split(subkey, 3)
        x = jax.random.normal(kx, (B, C, H, W), dtype=jnp.float32)
        w1 = jax.random.normal(k1, (Cr, C), dtype=jnp.float32) * 0.1
        w2 = jax.random.normal(k2, (C, Cr), dtype=jnp.float32) * 0.1
        out = jax.block_until_ready(se_layer(x, w1, w2))
        ref = se_layer_ref(x, w1, w2)
        assert out.shape == (B, C, H, W)
        assert jnp.allclose(out, ref, atol=1e-5, rtol=1e-4), (
            float(jnp.max(jnp.abs(out - ref))))

    k_a, k_b = jax.random.split(key)
    # Small demo case: BC=128 -> 2 row blocks of 64 (both cores busy on v7x),
    # HW=256 -> single full-extent HW block.
    _run_case(B=2, C=64, H=16, W=16, reduction=16, subkey=k_a)
    # Non-divisible case exercising cdiv grids + in-kernel masking:
    # BC=96 -> row_tile 48 (2 blocks); HW=4900 -> hw_tile 4096 with a masked
    # 804-lane tail in the pool sum and masked tail stores in the scale pass.
    _run_case(B=2, C=48, H=70, W=70, reduction=16, subkey=k_b)

    print("KERNEL_OK")
</pallas_src>

<mosaic_0001>
module attributes {stable_mosaic.version = 11 : i64} {
  func.func @_pool_kernel(%arg0: i32, %arg1: i32, %arg2: memref<64x256xf32, #tpu.memory_space<vmem>>, %arg3: memref<64x1xf32, #tpu.memory_space<vmem>>) attributes {dimension_semantics = [#tpu.dimension_semantics<parallel>, #tpu.dimension_semantics<arbitrary>], iteration_bounds = array<i64: 2, 1>, scalar_prefetch = 0 : i64, scratch_operands = 0 : i64, tpu.core_type = #tpu.core_type<tc>, window_params = [{transform_indices = @transform_0, window_bounds = array<i64: 64, 256>}, {transform_indices = @transform_1, window_bounds = array<i64: 64, 1>}]} {
    %c0_i32 = arith.constant 0 : i32
    %0 = arith.cmpi eq, %arg1, %c0_i32 : i32
    %1 = arith.extui %0 : i1 to i32
    %c0_i32_0 = arith.constant 0 : i32
    %2 = arith.cmpi ne, %1, %c0_i32_0 : i32
    scf.if %2 {
      %cst_8 = arith.constant 0.000000e+00 : f32
      %12 = vector.broadcast %cst_8 : f32 to vector<64x1xf32>
      %c0_9 = arith.constant 0 : index
      %c0_10 = arith.constant 0 : index
      %13 = vector.load %arg3[%c0_9, %c0_10] : memref<64x1xf32, #tpu.memory_space<vmem>>, vector<64x1xf32>
      tpu.vector_store %arg3[%c0_9, %c0_10], %12 {strides = array<i32>} : memref<64x1xf32, #tpu.memory_space<vmem>>, vector<64x1xf32>,
    } else {
    }
    %c0 = arith.constant 0 : index
    %c0_1 = arith.constant 0 : index
    %3 = vector.load %arg2[%c0, %c0_1] : memref<64x256xf32, #tpu.memory_space<vmem>>, vector<64x256xf32>
    %c0_2 = arith.constant 0 : index
    %c0_3 = arith.constant 0 : index
    %4 = vector.load %arg3[%c0_2, %c0_3] : memref<64x1xf32, #tpu.memory_space<vmem>>, vector<64x1xf32>
    %cst = arith.constant dense<0.000000e+00> : vector<64xf32>
    %5 = vector.multi_reduction <add>, %3, %cst [1] : vector<64x256xf32> to vector<64xf32>
    %6 = vector.shape_cast %5 : vector<64xf32> to vector<64x1xf32>
    %7 = arith.addf %4, %6 : vector<64x1xf32>
    %c0_4 = arith.constant 0 : index
    %c0_5 = arith.constant 0 : index
    %8 = vector.load %arg3[%c0_4, %c0_5] : memref<64x1xf32, #tpu.memory_space<vmem>>, vector<64x1xf32>
    tpu.vector_store %arg3[%c0_4, %c0_5], %7 {strides = array<i32>} : memref<64x1xf32, #tpu.memory_space<vmem>>, vector<64x1xf32>,
    %c0_i32_6 = arith.constant 0 : i32
    %9 = arith.cmpi eq, %arg1, %c0_i32_6 : i32
    %10 = arith.extui %9 : i1 to i32
    %c0_i32_7 = arith.constant 0 : i32
    %11 = arith.cmpi ne, %10, %c0_i32_7 : i32
    scf.if %11 {
      %c0_8 = arith.constant 0 : index
      %c0_9 = arith.constant 0 : index
      %12 = vector.load %arg3[%c0_8, %c0_9] : memref<64x1xf32, #tpu.memory_space<vmem>>, vector<64x1xf32>
      %cst_10 = arith.constant 3.906250e-03 : f32
      %13 = vector.broadcast %cst_10 : f32 to vector<64x1xf32>
      %14 = arith.mulf %12, %13 : vector<64x1xf32>
      %c0_11 = arith.constant 0 : index
      %c0_12 = arith.constant 0 : index
      %15 = vector.load %arg3[%c0_11, %c0_12] : memref<64x1xf32, #tpu.memory_space<vmem>>, vector<64x1xf32>
      tpu.vector_store %arg3[%c0_11, %c0_12], %14 {strides = array<i32>} : memref<64x1xf32, #tpu.memory_space<vmem>>, vector<64x1xf32>,
    } else {
    }
    return
  }
  func.func @transform_0(%arg0: i32, %arg1: i32) -> (i32, i32) {
    %c0_i32 = arith.constant 0 : i32
    return %arg0, %arg1 : i32, i32
  }
  func.func @transform_1(%arg0: i32, %arg1: i32) -> (i32, i32) {
    %c0_i32 = arith.constant 0 : i32
    %c0_i32_0 = arith.constant 0 : i32
    return %arg0, %c0_i32 : i32, i32
  }
}

</mosaic_0001>

<llo_original>
// kernel: tpu_custom_call.1
$region0: #{tpu_custom_call.1}
  #allocation0 [shape = 'u32[]', space=smem, size = 0x4, offset = 0x4, fixed_abs, tag = 'smem constant byte address 0x4 - core index']
  #allocation1 [shape = 'u32[72,128]{1,0:T(1,128)}', space=vmem, size = 0x9000, scoped, tag = 'internal scratch']
  %s0 = inlined_call_operand.hbm [shape: f32[128,256], index: 0, kind: input, shape index: {}]
  %s1 = inlined_call_operand.vmem [shape: f32[128,1], index: 1, kind: output, shape index: {}]
  %s2 = sld [smem:[#allocation0]]
  $region49: #{tpu_custom_call.1} parent=0
    _
  %s4 = ssub.s32 1, %s2
  %s5 = scalar_select 0, %s4, %s2
  $region1: #{tpu_custom_call.1} parent=0
    #allocation2 [shape = 'u8[131072]{0}', space=vmem, size = 0x20000, scoped, tag = 'input window, operand 0']
    #allocation3 [shape = 's32[2]{0}', space=sflag, size = 0x8, scoped, tag = 'scoped memory for tpu_custom_call.1']
    %6 = vsyncpa [#allocation3], 0
    %s7 = scalar_lea.sflag [#allocation3], 1
    %8 = vsyncpa %s7, 0
    loop: start=0, step=1, limit=4
    $region2: #{tpu_custom_call.1} parent=1 // loop_pre_header
      _
    $region3: #{tpu_custom_call.1} parent=1 // loop_header
      %s10 = sphi 0, %s14
      %p11 = scmp.ge.s32.totalorder %s10, 4
      %s17 = sphi 0, %s29
      %s18 = sphi 0, %s25
      %s19 = sphi 0, %s17
      %s20 = sphi 0, %s18
      %s21 = sphi 0, %s19
      %s22 = sphi 0, %s20
      %s34 = sphi 0, %s36
      %s37 = sphi 0, %s34
      %s38 = sphi 0, %s37
      %s54 = sphi 0, %s38
      %s60 = sphi 0, %s62
      %s63 = sphi 0, %s60
      %s64 = sphi 0, %s63
      %s80 = sphi 0, %s64
    $region4: #{tpu_custom_call.1} parent=1 // loop_header_branch
      %13 = sbr.rel (%p11) target = $region8
    $region5: #{tpu_custom_call.1} parent=1 // loop_body
      %s15 = ssub.s32 %s10, 1
      %s16 = ssub.s32 %s10, 2
      %s23 = sadd.s32 1, %s18
      %p24 = scmp.ge.s32.totalorder %s23, 1
      %s25 = scalar_select %p24, 0, %s23
      %s26 = sadd.s32 1, %s17
      %s27 = scalar_select %p24, %s26, %s17
      %p28 = scmp.ge.s32.totalorder %s27, 2
      %s29 = scalar_select %p28, 0, %s27
      %s30 = ssub.s32 %s17, %s29
      %s31 = ssub.s32 %s18, %s25
      %s32 = sor.u32 %s30, %s31
      %p33 = scmp.eq.s32.totalorder %s32, 0
      %s35 = sadd.s32 %s34, 1
      %s36 = scalar_select %p33, %s34, %s35
      %p39 = pneg %p33
      %p40 = scmp.eq.s32.totalorder %s10, 1
      %p41 = por %p39, %p40
      %p42 = scmp.ne.s32.totalorder %s34, %s37
      %p43 = scmp.eq.s32.totalorder %s10, 0
      %p44 = por %p42, %p43
      %p45 = scmp.ne.s32.totalorder %s34, %s37
      %p46 = scmp.eq.s32.totalorder %s15, 1
      %p47 = por %p45, %p46
      %p48 = scmp.ne.s32.totalorder %s37, %s38
      %p49 = scmp.eq.s32.totalorder %s15, 0
      %p50 = por %p48, %p49
      %p51 = scmp.ne.s32.totalorder %s37, %s38
      %p52 = scmp.eq.s32.totalorder %s16, 1
      %p53 = por %p51, %p52
      %p55 = scmp.ne.s32.totalorder %s38, %s54
      %p56 = scmp.eq.s32.totalorder %s16, 0
      %p57 = por %p55, %p56
      %s58 = ssub.s32 %s17, %s29
      %p59 = scmp.eq.s32.totalorder %s58, 0
      %s61 = sadd.s32 %s60, 1
      %s62 = scalar_select %p59, %s60, %s61
      %p65 = pneg %p59
      %p66 = scmp.eq.s32.totalorder %s10, 1
      %p67 = por %p65, %p66
      %p68 = scmp.ne.s32.totalorder %s60, %s63
      %p69 = scmp.eq.s32.totalorder %s10, 0
      %p70 = por %p68, %p69
      %p71 = scmp.ne.s32.totalorder %s60, %s63
      %p72 = scmp.eq.s32.totalorder %s15, 1
      %p73 = por %p71, %p72
      %p74 = scmp.ne.s32.totalorder %s63, %s64
      %p75 = scmp.eq.s32.totalorder %s15, 0
      %p76 = por %p74, %p75
      %p77 = scmp.ne.s32.totalorder %s63, %s64
      %p78 = scmp.eq.s32.totalorder %s16, 1
      %p79 = por %p77, %p78
      %p81 = scmp.ne.s32.totalorder %s64, %s80
      %p82 = scmp.eq.s32.totalorder %s16, 0
      %p83 = por %p81, %p82
      %p84 = scmp.le.s32.totalorder 1, %s10
      %p85 = scmp.lt.s32.totalorder %s10, 3
      %p86 = pnand %p84, %p85
      %p87 = pneg %p86
      // Predicated region
      $region9: #{tpu_custom_call.1} parent=5 // pred_check
        _
      $region10: #{tpu_custom_call.1} parent=5 // pred_check_branch
        %89 = sbr.rel (%p86) target = $region12
      $region11: #{tpu_custom_call.1} parent=5 // pred_region
        %s90 = ssub.s32 %s10, 1
      $region12: #{tpu_custom_call.1} parent=5 // pred_fallthru
        _
      %p91 = scmp.lt.s32.totalorder %s10, 2
      // Predicated region
      $region13: #{tpu_custom_call.1} parent=5 // pred_check
        %p92 = pneg %p91
      $region14: #{tpu_custom_call.1} parent=5 // pred_check_branch
        %94 = sbr.rel (%p92) target = $region16
      $region15: #{tpu_custom_call.1} parent=5 // pred_region
        // Predicated region
        $region17: #{tpu_custom_call.1} parent=15 // pred_check
          %p95 = pneg %p44
        $region18: #{tpu_custom_call.1} parent=15 // pred_check_branch
          %97 = sbr.rel (%p95) target = $region20
        $region19: #{tpu_custom_call.1} parent=15 // pred_region
          %s98 = sand.u32 %s34, 1
          %s99 = scalar_lea.sflag [#allocation3], %s98
          %s100 = sand.u32 %s34, 1
          %s101 = smul.addr %s100, 128
          %s102 = scalar_lea.vmem [#allocation2], %s101
          %s103 = smul.u32 8, %s17
          %s104 = smul.u32 2, %s18
          %106 = vsyncadd %s99, 0
          %s107 = smul.addr %s103, 2
          %s108 = sadd.s32 %s104, %s107
          %s109 = smul.addr %s108, 8
          %s110 = scalar_lea.hbm %s0, %s109
          %s111 = sshll.u32 %s110, 4
          %s112 = int_to_ptr.hbm [resolvable:$true] %s111
          %s113 = sshll.u32 %s102, 4
          %s114 = int_to_ptr.vmem [resolvable:$true] %s113
          %119 = dma.hbm_to_vmem [thread:$0]  %s112, 2048, %s114, %s99, 256, 256, 16
        $region20: #{tpu_custom_call.1} parent=15 // pred_fallthru
          _
      $region16: #{tpu_custom_call.1} parent=5 // pred_fallthru
        _
      %p120 = scmp.le.s32.totalorder 1, %s10
      %p121 = scmp.lt.s32.totalorder %s10, 3
      %p122 = pnand %p120, %p121
      %p123 = pneg %p122
      // Predicated region
      $region21: #{tpu_custom_call.1} parent=5 // pred_check
        _
      $region22: #{tpu_custom_call.1} parent=5 // pred_check_branch
        %125 = sbr.rel (%p122) target = $region24
      $region23: #{tpu_custom_call.1} parent=5 // pred_region
        %s126 = ssub.s32 %s10, 1
        %s127 = sand.u32 %s37, 1
        %s128 = scalar_lea.sflag [#allocation3], %s127
        %s129 = sand.u32 %s37, 1
        %s130 = smul.addr %s129, 128
        %s131 = scalar_lea.vmem [#allocation2], %s130
        // Predicated region
        $region25: #{tpu_custom_call.1} parent=23 // pred_check
          %p132 = pneg %p50
        $region26: #{tpu_custom_call.1} parent=23 // pred_check_branch
          %134 = sbr.rel (%p132) target = $region28
        $region27: #{tpu_custom_call.1} parent=23 // pred_region
          %136 = dma.done %s128, 2048
        $region28: #{tpu_custom_call.1} parent=23 // pred_fallthru
          _
        %s137 = sand.u32 %s37, 1
        %s138 = scalar_lea.sflag [#allocation3], %s137
        %s139 = sand.u32 %s37, 1
        %s140 = smul.addr %s139, 128
        %s141 = scalar_lea.vmem [#allocation2], %s140
        %p142 = pneg %p50
        %p143 = pneg %p47
        %p144 = pneg %p76
        %p145 = pneg %p73
        %s146 = smul.u32 8, %s19
        %p147 = scmp.lt.s32.totalorder %s146, 15
        %s148 = scalar_select %p147, %s146, 15
        %s149 = smul.addr %s148, 8
        %s150 = scalar_lea.vmem %s1, %s149
        %s151 = smul.u32 8, %s19
        %s152 = smul.u32 2, %s20
        %s153 = smul.u32 8, %s19
        %p154 = scmp.lt.s32.totalorder %s153, 15
        %s155 = scalar_select %p154, %s153, 15
        %s156 = smul.addr %s155, 8
        %s157 = scalar_lea.vmem %s1, %s156
        %s158 = smul.u32 8, %s19
        %p159 = scmp.eq.s32.totalorder %s20, 0
        // Predicated region
        $region29: #{tpu_custom_call.1} parent=23 // pred_check
          %p160 = pneg %p159
        $region30: #{tpu_custom_call.1} parent=23 // pred_check_branch
          %162 = sbr.rel (%p160) target = $region32
        $region31: #{tpu_custom_call.1} parent=23 // pred_region
          %vm163 = vcmask 7168
          %164 = vst.msk [vmem:[%s157] sm:$0xff] %vm163, 0.0
          %165 = vst.msk [vmem:[%s157 + $0x8] sm:$0xff] %vm163, 0.0
          %166 = vst.msk [vmem:[%s157 + $0x10] sm:$0xff] %vm163, 0.0
          %167 = vst.msk [vmem:[%s157 + $0x18] sm:$0xff] %vm163, 0.0
          %168 = vst.msk [vmem:[%s157 + $0x20] sm:$0xff] %vm163, 0.0
          %169 = vst.msk [vmem:[%s157 + $0x28] sm:$0xff] %vm163, 0.0
          %170 = vst.msk [vmem:[%s157 + $0x30] sm:$0xff] %vm163, 0.0
          %171 = vst.msk [vmem:[%s157 + $0x38] sm:$0xff] %vm163, 0.0
        $region32: #{tpu_custom_call.1} parent=23 // pred_fallthru
          _
        %v172 = vld [vmem:[%s131] sm:$0xff]
        %v173 = vld [vmem:[%s131 + $0x8] sm:$0xff]
        %v174 = vld [vmem:[%s131 + $0x10] sm:$0xff]
        %v175 = vld [vmem:[%s131 + $0x18] sm:$0xff]
        %v176 = vld [vmem:[%s131 + $0x20] sm:$0xff]
        %v177 = vld [vmem:[%s131 + $0x28] sm:$0xff]
        %v178 = vld [vmem:[%s131 + $0x30] sm:$0xff]
        %v179 = vld [vmem:[%s131 + $0x38] sm:$0xff]
        %v180 = vld [vmem:[%s131 + $0x40] sm:$0xff]
        %v181 = vld [vmem:[%s131 + $0x48] sm:$0xff]
        %v182 = vld [vmem:[%s131 + $0x50] sm:$0xff]
        %v183 = vld [vmem:[%s131 + $0x58] sm:$0xff]
        %v184 = vld [vmem:[%s131 + $0x60] sm:$0xff]
        %v185 = vld [vmem:[%s131 + $0x68] sm:$0xff]
        %v186 = vld [vmem:[%s131 + $0x70] sm:$0xff]
        %v187 = vld [vmem:[%s131 + $0x78] sm:$0xff]
        %v188 = vld [vmem:[%s157] sm:$0xff]
        %v189 = vld [vmem:[%s157 + $0x8] sm:$0xff]
        %v190 = vld [vmem:[%s157 + $0x10] sm:$0xff]
        %v191 = vld [vmem:[%s157 + $0x18] sm:$0xff]
        %v192 = vld [vmem:[%s157 + $0x20] sm:$0xff]
        %v193 = vld [vmem:[%s157 + $0x28] sm:$0xff]
        %v194 = vld [vmem:[%s157 + $0x30] sm:$0xff]
        %v195 = vld [vmem:[%s157 + $0x38] sm:$0xff]
        %v196 = vadd.f32 %v172, %v173
        %197 = vadd.xlane.f32.xlu0 %v196
        %v198 = vpop.xlane.xlu0 %197
        %v199 = vadd.f32 %v174, %v175
        %200 = vadd.xlane.f32.xlu0 %v199
        %v201 = vpop.xlane.xlu0 %200
        %v202 = vadd.f32 %v176, %v177
        %203 = vadd.xlane.f32.xlu0 %v202
        %v204 = vpop.xlane.xlu0 %203
        %v205 = vadd.f32 %v178, %v179
        %206 = vadd.xlane.f32.xlu0 %v205
        %v207 = vpop.xlane.xlu0 %206
        %v208 = vadd.f32 %v180, %v181
        %209 = vadd.xlane.f32.xlu0 %v208
        %v210 = vpop.xlane.xlu0 %209
        %v211 = vadd.f32 %v182, %v183
        %212 = vadd.xlane.f32.xlu0 %v211
        %v213 = vpop.xlane.xlu0 %212
        %v214 = vadd.f32 %v184, %v185
        %215 = vadd.xlane.f32.xlu0 %v214
        %v216 = vpop.xlane.xlu0 %215
        %v217 = vadd.f32 %v186, %v187
        %218 = vadd.xlane.f32.xlu0 %v217
        %v219 = vpop.xlane.xlu0 %218
        %v220 = vadd.f32 %v188, %v198
        %v221 = vadd.f32 %v189, %v201
        %v222 = vadd.f32 %v190, %v204
        %v223 = vadd.f32 %v191, %v207
        %v224 = vadd.f32 %v192, %v210
        %v225 = vadd.f32 %v193, %v213
        %v226 = vadd.f32 %v194, %v216
        %v227 = vadd.f32 %v195, %v219
        %vm228 = vcmask 7168
        %229 = vst.msk [vmem:[%s157] sm:$0xff] %vm228, %v220
        %230 = vst.msk [vmem:[%s157 + $0x8] sm:$0xff] %vm228, %v221
        %231 = vst.msk [vmem:[%s157 + $0x10] sm:$0xff] %vm228, %v222
        %232 = vst.msk [vmem:[%s157 + $0x18] sm:$0xff] %vm228, %v223
        %233 = vst.msk [vmem:[%s157 + $0x20] sm:$0xff] %vm228, %v224
        %234 = vst.msk [vmem:[%s157 + $0x28] sm:$0xff] %vm228, %v225
        %235 = vst.msk [vmem:[%s157 + $0x30] sm:$0xff] %vm228, %v226
        %236 = vst.msk [vmem:[%s157 + $0x38] sm:$0xff] %vm228, %v227
        // Predicated region
        $region33: #{tpu_custom_call.1} parent=23 // pred_check
          %p237 = pneg %p159
        $region34: #{tpu_custom_call.1} parent=23 // pred_check_branch
          %239 = sbr.rel (%p237) target = $region36
        $region35: #{tpu_custom_call.1} parent=23 // pred_region
          %v240 = vld [vmem:[%s157] sm:$0xff]
          %v241 = vld [vmem:[%s157 + $0x8] sm:$0xff]
          %v242 = vld [vmem:[%s157 + $0x10] sm:$0xff]
          %v243 = vld [vmem:[%s157 + $0x18] sm:$0xff]
          %v244 = vld [vmem:[%s157 + $0x20] sm:$0xff]
          %v245 = vld [vmem:[%s157 + $0x28] sm:$0xff]
          %v246 = vld [vmem:[%s157 + $0x30] sm:$0xff]
          %v247 = vld [vmem:[%s157 + $0x38] sm:$0xff]
          %v248 = vmul.f32 %v240, 0.00390625
          %v249 = vmul.f32 %v241, 0.00390625
          %v250 = vmul.f32 %v242, 0.00390625
          %v251 = vmul.f32 %v243, 0.00390625
          %v252 = vmul.f32 %v244, 0.00390625
          %v253 = vmul.f32 %v245, 0.00390625
          %v254 = vmul.f32 %v246, 0.00390625
          %v255 = vmul.f32 %v247, 0.00390625
          %256 = vst.msk [vmem:[%s157] sm:$0xff] %vm228, %v248
          %257 = vst.msk [vmem:[%s157 + $0x8] sm:$0xff] %vm228, %v249
          %258 = vst.msk [vmem:[%s157 + $0x10] sm:$0xff] %vm228, %v250
          %259 = vst.msk [vmem:[%s157 + $0x18] sm:$0xff] %vm228, %v251
          %260 = vst.msk [vmem:[%s157 + $0x20] sm:$0xff] %vm228, %v252
          %261 = vst.msk [vmem:[%s157 + $0x28] sm:$0xff] %vm228, %v253
          %262 = vst.msk [vmem:[%s157 + $0x30] sm:$0xff] %vm228, %v254
          %263 = vst.msk [vmem:[%s157 + $0x38] sm:$0xff] %vm228, %v255
        $region36: #{tpu_custom_call.1} parent=23 // pred_fallthru
          _
        %s264 = smul.u32 8, %s19
        %p265 = scmp.lt.s32.totalorder %s264, 15
        %s266 = scalar_select %p265, %s264, 15
        %s267 = smul.addr %s266, 8
        %s268 = scalar_lea.vmem %s1, %s267
        // Predicated region
        $region37: #{tpu_custom_call.1} parent=23 // pred_check
          %p269 = pneg %p73
        $region38: #{tpu_custom_call.1} parent=23 // pred_check_branch
          %271 = sbr.rel (%p269) target = $region40
        $region39: #{tpu_custom_call.1} parent=23 // pred_region
          %s272 = smul.u32 8, %s19
        $region40: #{tpu_custom_call.1} parent=23 // pred_fallthru
          _
      $region24: #{tpu_custom_call.1} parent=5 // pred_fallthru
        _
      %p273 = scmp.le.s32.totalorder 2, %s10
      // Predicated region
      $region41: #{tpu_custom_call.1} parent=5 // pred_check
        %p274 = pneg %p273
      $region42: #{tpu_custom_call.1} parent=5 // pred_check_branch
        %276 = sbr.rel (%p274) target = $region44
      $region43: #{tpu_custom_call.1} parent=5 // pred_region
        %s277 = ssub.s32 %s10, 2
        // Predicated region
        $region45: #{tpu_custom_call.1} parent=43 // pred_check
          %p278 = pneg %p79
        $region46: #{tpu_custom_call.1} parent=43 // pred_check_branch
          %280 = sbr.rel (%p278) target = $region48
        $region47: #{tpu_custom_call.1} parent=43 // pred_region
          %s281 = smul.u32 8, %s21
          %p282 = scmp.lt.s32.totalorder %s281, 15
          %s283 = scalar_select %p282, %s281, 15
          %s284 = smul.addr %s283, 8
          %s285 = scalar_lea.vmem %s1, %s284
        $region48: #{tpu_custom_call.1} parent=43 // pred_fallthru
          _
      $region44: #{tpu_custom_call.1} parent=5 // pred_fallthru
        _
    $region6: #{tpu_custom_call.1} parent=1 // loop_footer
      %s14 = sadd.s32 1, %s10
    $region7: #{tpu_custom_call.1} parent=1 // loop_footer_branch
      %9 = sbr.rel target = $region3
    $region8: #{tpu_custom_call.1} parent=1 // loop_exit
      _
    %286 = vsyncpa [#allocation3], 1
    %s287 = scalar_lea.sflag [#allocation3], 1
    %288 = vsyncpa %s287, 1

</llo_original>
